<compile_context>
chip_gen: v7x
topology: tpu7x:2x2x1
jax: 0.10.0
libtpu: 0.0.40
codegen_flags: <defaults>
</compile_context>

<pallas_src>
import math

import jax
import jax.numpy as jnp
from jax.experimental import pallas as pl
from jax.experimental.pallas import tpu as pltpu


_LANES = 128
_TILE_BYTES = 4 << 20      # ~4 MiB per streamed tile (sweet spot on v5e/v6e/v7x)
_MAX_TW = 2048             # width-block lanes when W is split (multiple of 128)
_MAX_FOLD_W = 8192         # cap on folded row width


def _affine_kernel(scale_ref, shift_ref, z_ref, y_ref):
    # (1, tw) params broadcast over the (tb, tw) batch tile: one VPU mul + add
    # per element, fully lane-dense.
    y_ref[...] = scale_ref[...] * z_ref[...] + shift_ref[...]


def _pick_tiles(R, W, itemsize):
    """Byte-budget (tb, tw) tile selection. Blocks are (8,128)-legal."""
    # Width blocking: full W when modest, else 2048-lane blocks (ragged tail
    # blocks are masked by Pallas).
    tw = W if W <= _MAX_TW else _MAX_TW
    # Row blocking from the byte budget (multiple of 8, ragged tail masked).
    rows_budget = max(8, (_TILE_BYTES // (tw * itemsize) // 8) * 8)
    tb = R if R <= rows_budget else rows_budget
    # If everything would land in a single >2 MiB block, split rows so the
    # pipeline (and the v7x megacore split) has more than one grid step.
    if tb == R and tw == W and R * W * itemsize > (2 << 20) and R >= 16:
        tb = max(8, ((-(-R // 4)) + 7) // 8 * 8)
    return tb, tw


def affine_forward(z, log_scale, shift):
    """z: [B, D]. log_scale, shift: [D].

    Returns (y [B, D], log_det_jacobian [B]) matching Affine.forward."""
    B, D = z.shape
    dtype = z.dtype
    itemsize = jnp.dtype(dtype).itemsize

    # exp() hoisted out of the kernel (perf review): a D-element wrapper op.
    scale = jnp.exp(log_scale).astype(dtype)
    shift_c = shift.astype(dtype)

    # ---- generalized lane-dense repack (layout plumbing only) --------------
    Wf = None
    if D % _LANES != 0:
        cand = D * (_LANES // math.gcd(D, _LANES))   # lcm(D, 128)
        if cand <= _MAX_FOLD_W:
            Wf = cand
    if Wf is not None:
        reps = Wf // D
        N = B * D
        R = -(-N // Wf)
        pad = R * Wf - N
        zf = z.reshape(-1)
        if pad:
            zf = jnp.pad(zf, (0, pad))
        z2 = zf.reshape(R, Wf)
        scale2 = jnp.tile(scale, reps).reshape(1, Wf)
        shift2 = jnp.tile(shift_c, reps).reshape(1, Wf)
        W = Wf
    else:
        # D is a multiple of 128 (already lane-dense) or too wide to fold.
        W, R = D, B
        z2 = z
        scale2 = scale.reshape(1, W)
        shift2 = shift_c.reshape(1, W)

    # ---- byte-based tiling over rows AND width ------------------------------
    tb, tw = _pick_tiles(R, W, itemsize)
    grid = (pl.cdiv(R, tb), pl.cdiv(W, tw))

    y2 = pl.pallas_call(
        _affine_kernel,
        out_shape=jax.ShapeDtypeStruct((R, W), dtype),
        grid=grid,
        in_specs=[
            pl.BlockSpec((1, tw), lambda i, j: (0, j)),    # scale: resident over i
            pl.BlockSpec((1, tw), lambda i, j: (0, j)),    # shift: resident over i
            pl.BlockSpec((tb, tw), lambda i, j: (i, j)),   # z: streamed
        ],
        out_specs=pl.BlockSpec((tb, tw), lambda i, j: (i, j)),
        compiler_params=pltpu.CompilerParams(
            dimension_semantics=("parallel", "parallel"),
            vmem_limit_bytes=32 << 20,   # 2x in + 2x out 4 MiB tiles fit easily
        ),
    )(scale2, shift2, z2)

    if Wf is not None:
        y = y2.reshape(-1)[: B * D].reshape(B, D)
    else:
        y = y2

    # log|det J| = sum(log_scale) broadcast to [B] (stable form of
    # log(prod(exp(log_scale)))); returned in the parameter dtype.
    ldj = jnp.broadcast_to(
        jnp.sum(log_scale.astype(jnp.float32)).astype(log_scale.dtype), (B,)
    )
    return y, ldj


if __name__ == "__main__":
    key = jax.random.PRNGKey(0)

    def run_case(B, D, key):
        kz, kls, ksh = jax.random.split(key, 3)
        z = jax.random.normal(kz, (B, D), dtype=jnp.float32)
        # Module inits params to zero; use small nonzero values so the compute
        # path is actually exercised.
        log_scale = 0.1 * jax.random.normal(kls, (D,), dtype=jnp.float32)
        shift = 0.1 * jax.random.normal(ksh, (D,), dtype=jnp.float32)

        y, ldj = affine_forward(z, log_scale, shift)
        y = jax.block_until_ready(y)
        ldj = jax.block_until_ready(ldj)

        # Pure-JAX reference (stable ldj form, equivalent to the torch formula).
        y_ref = jnp.exp(log_scale) * z + shift
        ldj_ref = jnp.full((B,), jnp.sum(log_scale), dtype=log_scale.dtype)
        assert jnp.allclose(y, y_ref, atol=1e-5, rtol=1e-5)
        assert jnp.allclose(ldj, ldj_ref, atol=1e-5, rtol=1e-5)

    k1, k2 = jax.random.split(key)
    run_case(8, 2, k1)      # module default dim=2: exercises pad-and-fold path
    run_case(16, 256, k2)   # lane-aligned D: exercises the no-fold path

    print("KERNEL_OK")
</pallas_src>

<mosaic_0001>
module attributes {stable_mosaic.version = 11 : i64} {
  func.func @_affine_kernel(%arg0: i32, %arg1: i32, %arg2: memref<1x128xf32, #tpu.memory_space<vmem>>, %arg3: memref<1x128xf32, #tpu.memory_space<vmem>>, %arg4: memref<1x128xf32, #tpu.memory_space<vmem>>, %arg5: memref<1x128xf32, #tpu.memory_space<vmem>>) attributes {dimension_semantics = [#tpu.dimension_semantics<parallel>, #tpu.dimension_semantics<parallel>], iteration_bounds = array<i64: 1, 1>, scalar_prefetch = 0 : i64, scratch_operands = 0 : i64, tpu.core_type = #tpu.core_type<tc>, window_params = [{transform_indices = @transform_0, window_bounds = array<i64: 1, 128>}, {transform_indices = @transform_1, window_bounds = array<i64: 1, 128>}, {transform_indices = @transform_2, window_bounds = array<i64: 1, 128>}, {transform_indices = @transform_3, window_bounds = array<i64: 1, 128>}]} {
    %c0 = arith.constant 0 : index
    %c0_0 = arith.constant 0 : index
    %0 = vector.load %arg2[%c0, %c0_0] : memref<1x128xf32, #tpu.memory_space<vmem>>, vector<1x128xf32>
    %c0_1 = arith.constant 0 : index
    %c0_2 = arith.constant 0 : index
    %1 = vector.load %arg4[%c0_1, %c0_2] : memref<1x128xf32, #tpu.memory_space<vmem>>, vector<1x128xf32>
    %2 = arith.mulf %0, %1 : vector<1x128xf32>
    %c0_3 = arith.constant 0 : index
    %c0_4 = arith.constant 0 : index
    %3 = vector.load %arg3[%c0_3, %c0_4] : memref<1x128xf32, #tpu.memory_space<vmem>>, vector<1x128xf32>
    %4 = arith.addf %2, %3 : vector<1x128xf32>
    %c0_5 = arith.constant 0 : index
    %c0_6 = arith.constant 0 : index
    %5 = vector.load %arg5[%c0_5, %c0_6] : memref<1x128xf32, #tpu.memory_space<vmem>>, vector<1x128xf32>
    tpu.vector_store %arg5[%c0_5, %c0_6], %4 {strides = array<i32>} : memref<1x128xf32, #tpu.memory_space<vmem>>, vector<1x128xf32>,
    return
  }
  func.func @transform_0(%arg0: i32, %arg1: i32) -> (i32, i32) {
    %c0_i32 = arith.constant 0 : i32
    %c0_i32_0 = arith.constant 0 : i32
    return %c0_i32, %arg1 : i32, i32
  }
  func.func @transform_1(%arg0: i32, %arg1: i32) -> (i32, i32) {
    %c0_i32 = arith.constant 0 : i32
    %c0_i32_0 = arith.constant 0 : i32
    return %c0_i32, %arg1 : i32, i32
  }
  func.func @transform_2(%arg0: i32, %arg1: i32) -> (i32, i32) {
    %c0_i32 = arith.constant 0 : i32
    return %arg0, %arg1 : i32, i32
  }
  func.func @transform_3(%arg0: i32, %arg1: i32) -> (i32, i32) {
    %c0_i32 = arith.constant 0 : i32
    return %arg0, %arg1 : i32, i32
  }
}

</mosaic_0001>

<llo_original>
// kernel: tpu_custom_call.1
$region0: #{tpu_custom_call.1}
  #allocation0 [shape = 'u32[]', space=smem, size = 0x4, offset = 0x4, fixed_abs, tag = 'smem constant byte address 0x4 - core index']
  #allocation1 [shape = 'u32[144,128]{1,0:T(1,128)}', space=vmem, size = 0x12000, scoped, tag = 'internal scratch']
  %s0 = inlined_call_operand.hbm [shape: f32[1,128], index: 0, kind: input, shape index: {}]
  %s1 = inlined_call_operand.vmem [shape: f32[1,128], index: 1, kind: input, shape index: {}]
  %s2 = inlined_call_operand.vmem [shape: f32[1,128], index: 2, kind: input, shape index: {}]
  %s3 = inlined_call_operand.hbm [shape: f32[1,128], index: 3, kind: output, shape index: {}]
  %s4 = sld [smem:[#allocation0]]
  $region26: #{tpu_custom_call.1} parent=0
    _
  %s6 = ssub.s32 1, %s4
  %s7 = scalar_select 0, %s6, %s4
  $region1: #{tpu_custom_call.1} parent=0
    #allocation2 [shape = 'u8[512]{0}', space=vmem, size = 0x400, scoped, tag = 'input window, operand 0, single buffered']
    #allocation3 [shape = 's32[1]{0}', space=sflag, size = 0x4, scoped, tag = 'scoped memory for tpu_custom_call.1']
    #allocation4 [shape = 's32[1]{0}', space=sflag, size = 0x4, scoped, tag = 'scoped memory for tpu_custom_call.1']
    #allocation5 [shape = 'u8[512]{0}', space=vmem, size = 0x400, scoped, tag = 'output window, operand 0, single buffered']
    %8 = vsyncpa [#allocation3], 0
    %9 = vsyncpa [#allocation4], 0
    // Predicated region
    $region2: #{tpu_custom_call.1} parent=1 // pred_check
      _
    $region3: #{tpu_custom_call.1} parent=1 // pred_check_branch
      %11 = sbr.rel (0) target = $region5
    $region4: #{tpu_custom_call.1} parent=1 // pred_region
      %s13 = ssub.s32 16, 16
      %14 = vsyncadd [#allocation3], %s13
      %s16 = sshll.u32 [#allocation2], 4
      %s17 = int_to_ptr.vmem [resolvable:$true] %s16
      %19 = dma.hbm_to_vmem [thread:$0]  %s0, 16, %s17, [#allocation3]
    $region5: #{tpu_custom_call.1} parent=1 // pred_fallthru
      _
    // Predicated region
    $region6: #{tpu_custom_call.1} parent=1 // pred_check
      _
    $region7: #{tpu_custom_call.1} parent=1 // pred_check_branch
      %21 = sbr.rel (0) target = $region9
    $region8: #{tpu_custom_call.1} parent=1 // pred_region
      _
    $region9: #{tpu_custom_call.1} parent=1 // pred_fallthru
      _
    // Predicated region
    $region10: #{tpu_custom_call.1} parent=1 // pred_check
      _
    $region11: #{tpu_custom_call.1} parent=1 // pred_check_branch
      %23 = sbr.rel (0) target = $region13
    $region12: #{tpu_custom_call.1} parent=1 // pred_region
      _
    $region13: #{tpu_custom_call.1} parent=1 // pred_fallthru
      _
    // Predicated region
    $region14: #{tpu_custom_call.1} parent=1 // pred_check
      _
    $region15: #{tpu_custom_call.1} parent=1 // pred_check_branch
      %25 = sbr.rel (0) target = $region17
    $region16: #{tpu_custom_call.1} parent=1 // pred_region
      %26 = dma.done [#allocation3], 16
    $region17: #{tpu_custom_call.1} parent=1 // pred_fallthru
      _
    %v27 = vld [vmem:[#allocation2] sm:$0x1]
    %v28 = vld [vmem:[%s2] sm:$0x1]
    %v29 = vmul.f32 %v27, %v28
    %v30 = vld [vmem:[%s1] sm:$0x1]
    %v31 = vadd.f32 %v29, %v30
    %32 = vst [vmem:[#allocation5] sm:$0x1] %v31
    // Predicated region
    $region18: #{tpu_custom_call.1} parent=1 // pred_check
      _
    $region19: #{tpu_custom_call.1} parent=1 // pred_check_branch
      %34 = sbr.rel (0) target = $region21
    $region20: #{tpu_custom_call.1} parent=1 // pred_region
      %s36 = ssub.s32 16, 16
      %37 = vsyncadd [#allocation4], %s36
      %s39 = sshll.u32 [#allocation5], 4
      %s40 = int_to_ptr.vmem [resolvable:$true] %s39
      %42 = dma.vmem_to_hbm [thread:$0]  %s40, 16, %s3, [#allocation4]
    $region21: #{tpu_custom_call.1} parent=1 // pred_fallthru
      _
    // Predicated region
    $region22: #{tpu_custom_call.1} parent=1 // pred_check
      _
    $region23: #{tpu_custom_call.1} parent=1 // pred_check_branch
      %44 = sbr.rel (0) target = $region25
    $region24: #{tpu_custom_call.1} parent=1 // pred_region
      %45 = dma.done [#allocation4], 16
    $region25: #{tpu_custom_call.1} parent=1 // pred_fallthru
      _
    %46 = vsyncpa [#allocation3], 1
    %47 = vsyncpa [#allocation4], 1

</llo_original>
